<compile_context>
chip_gen: v7x
topology: tpu7x:2x2x1
jax: 0.10.0
libtpu: 0.0.40
codegen_flags: <defaults>
</compile_context>

<pallas_src>
import jax
import jax.numpy as jnp
from jax.experimental import pallas as pl
from jax.experimental.pallas import tpu as pltpu


def _onehot_gather_kernel(labels_ref, tab_t_ref, out_ref):
    # labels_ref: (1, TB)  int32 label tile (lane-dense)
    # tab_t_ref:  (D, N)   transposed GPS table, VMEM-resident across the grid
    # out_ref:    (D, TB)  transposed output tile (batch on the lane axis)
    n = tab_t_ref.shape[1]
    tb = labels_ref.shape[1]

    lbl = labels_ref[...]                                   # (1, TB)
    lbl = jnp.where(lbl < 0, lbl + n, lbl)                  # python-style negative wrap
    lbl = jnp.clip(lbl, 0, n - 1)                           # clamp like jnp gather

    row_ids = jax.lax.broadcasted_iota(jnp.int32, (n, tb), 0)     # (N, TB)
    onehot_t = (row_ids == lbl).astype(tab_t_ref.dtype)           # (N, TB), VPU compare

    # (D, N) @ (N, TB) -> (D, TB) on the MXU; f32 accumulation.
    out = jnp.dot(tab_t_ref[...], onehot_t, preferred_element_type=jnp.float32)
    out_ref[...] = out.astype(out_ref.dtype)


def _round_up(x: int, m: int) -> int:
    return ((x + m - 1) // m) * m


def id_to_gps_lookup(table: jax.Array, labels: jax.Array, *,
                     block_b: int = 1024, min_pallas_batch: int = 1024) -> jax.Array:
    """Returns table[labels] with shape labels.shape + (D,).

    Small batches use a plain XLA gather (kernel launch overhead dominates);
    larger batches use the Pallas on-chip one-hot-matmul gather.
    """
    N, D = table.shape
    flat = labels.reshape(-1).astype(jnp.int32)
    B = flat.shape[0]

    if B < min_pallas_batch:
        # Tiny lookup: XLA gather is strictly faster than any kernel here.
        return table[flat].reshape(labels.shape + (D,))

    # Lane-dense label tile size: multiple of 128, capped at block_b.
    tb = min(_round_up(block_b, 128), _round_up(B, 128))
    b_pad = _round_up(B, tb)

    flat_pad = jnp.pad(flat, (0, b_pad - B))          # pad labels (extra rows discarded)
    labels_2d = flat_pad.reshape(1, b_pad)            # (1, B_pad) int32, lane-dense
    table_t = table.T                                 # (D, N)

    grid = (b_pad // tb,)
    out_t = pl.pallas_call(
        _onehot_gather_kernel,
        out_shape=jax.ShapeDtypeStruct((D, b_pad), table.dtype),
        grid_spec=pltpu.PrefetchScalarGridSpec(
            num_scalar_prefetch=0,
            grid=grid,
            in_specs=[
                # label tile i: (1, TB), lane-dense VMEM input
                pl.BlockSpec((1, tb), lambda i: (0, i)),
                # whole (transposed) table resident in VMEM, DMA'd once
                pl.BlockSpec((D, N), lambda i: (0, 0)),
            ],
            # lane-dense (D, TB) output tile -> unmasked stores
            out_specs=pl.BlockSpec((D, tb), lambda i: (0, i)),
        ),
        compiler_params=pltpu.CompilerParams(
            dimension_semantics=("parallel",)),
    )(labels_2d, table_t)

    out = out_t.T[:B]                                 # (B, D)
    return out.reshape(labels.shape + (D,))


class IdToGPS:
    """JAX/Pallas equivalent of the PyTorch IdToGPS module.

    The id->gps table is passed in directly (synthetic, deterministic) instead
    of torch.load.
    """

    def __init__(self, id_to_gps_table: jax.Array):
        # id_to_gps_table: float32 [num_ids, 2]
        self.id_to_gps = id_to_gps_table

    def __call__(self, x):
        if isinstance(x, dict):
            labels = x["label"]
        else:
            labels = x
        return {"gps": id_to_gps_lookup(self.id_to_gps, labels)}


if __name__ == "__main__":
    key = jax.random.PRNGKey(0)
    k_tab, k_small, k_big = jax.random.split(key, 3)

    num_ids = 64        # e.g. number of countries / quadtree cells
    gps_dim = 2         # (latitude, longitude)

    # Deterministic synthetic id->gps table: lat in [-90, 90], lon in [-180, 180]
    u = jax.random.uniform(k_tab, (num_ids, gps_dim), dtype=jnp.float32)
    table = u * jnp.array([180.0, 360.0], jnp.float32) - jnp.array(
        [90.0, 180.0], jnp.float32)

    module = IdToGPS(table)

    # --- small batch: takes the XLA-gather fast path (kernel not worth it) ---
    small_labels = jax.random.randint(k_small, (8,), 0, num_ids, dtype=jnp.int32)
    out_small = jax.block_until_ready(module(small_labels)["gps"])
    assert out_small.shape == (8, gps_dim)
    assert jnp.allclose(out_small, table[small_labels]), "small-batch path mismatch"

    # dict-input path (same code path as the PyTorch module)
    out_dict = jax.block_until_ready(
        module({"label": small_labels, "img": jnp.zeros((8, 3, 4, 4))})["gps"])
    assert jnp.allclose(out_dict, table[small_labels]), "dict-input path mismatch"

    # --- larger batch (not a tile multiple): exercises the Pallas kernel ---
    big_labels = jax.random.randint(k_big, (1500,), 0, num_ids, dtype=jnp.int32)
    out_big = jax.block_until_ready(module(big_labels)["gps"])
    ref_big = table[big_labels]
    assert out_big.shape == (1500, gps_dim)
    assert out_big.dtype == table.dtype
    assert jnp.allclose(out_big, ref_big), "pallas gather mismatch vs reference"

    print("KERNEL_OK")
</pallas_src>

<mosaic_0001>
module attributes {stable_mosaic.version = 11 : i64} {
  func.func @_onehot_gather_kernel(%arg0: i32, %arg1: memref<1x1024xi32, #tpu.memory_space<vmem>>, %arg2: memref<2x64xf32, #tpu.memory_space<vmem>>, %arg3: memref<2x1024xf32, #tpu.memory_space<vmem>>) attributes {dimension_semantics = [#tpu.dimension_semantics<parallel>], iteration_bounds = array<i64: 2>, scalar_prefetch = 0 : i64, scratch_operands = 0 : i64, tpu.core_type = #tpu.core_type<tc>, window_params = [{transform_indices = @transform_0, window_bounds = array<i64: 1, 1024>}, {pipeline_mode = #tpu.pipeline_mode<synchronous>, transform_indices = @transform_1, window_bounds = array<i64: 2, 64>}, {transform_indices = @transform_2, window_bounds = array<i64: 2, 1024>}]} {
    %c0 = arith.constant 0 : index
    %c0_0 = arith.constant 0 : index
    %0 = vector.load %arg1[%c0, %c0_0] : memref<1x1024xi32, #tpu.memory_space<vmem>>, vector<1x1024xi32>
    %c0_i32 = arith.constant 0 : i32
    %1 = vector.broadcast %c0_i32 : i32 to vector<1x1024xi32>
    %2 = arith.cmpi slt, %0, %1 : vector<1x1024xi32>
    %c64_i32 = arith.constant 64 : i32
    %3 = vector.broadcast %c64_i32 : i32 to vector<1x1024xi32>
    %4 = arith.addi %0, %3 : vector<1x1024xi32>
    %5 = arith.select %2, %4, %0 : vector<1x1024xi1>, vector<1x1024xi32>
    %c0_i32_1 = arith.constant 0 : i32
    %c63_i32 = arith.constant 63 : i32
    %6 = vector.broadcast %c0_i32_1 : i32 to vector<1x1024xi32>
    %7 = arith.maxsi %6, %5 : vector<1x1024xi32>
    %8 = vector.broadcast %c63_i32 : i32 to vector<1x1024xi32>
    %9 = arith.minsi %8, %7 : vector<1x1024xi32>
    %10 = tpu.iota {dimensions = array<i32: 0>} : vector<64x1024xi32>
    %11 = vector.broadcast %9 : vector<1x1024xi32> to vector<64x1024xi32>
    %12 = arith.cmpi eq, %10, %11 : vector<64x1024xi32>
    %13 = arith.extui %12 : vector<64x1024xi1> to vector<64x1024xi32>
    %14 = arith.sitofp %13 : vector<64x1024xi32> to vector<64x1024xf32>
    %c0_2 = arith.constant 0 : index
    %c0_3 = arith.constant 0 : index
    %15 = vector.load %arg2[%c0_2, %c0_3] : memref<2x64xf32, #tpu.memory_space<vmem>>, vector<2x64xf32>
    %cst = arith.constant dense<0.000000e+00> : vector<2x1024xf32>
    %16 = tpu.matmul %15, %14, %cst {dimension_numbers = #tpu.dot_dimension_numbers<[1], [0], [0], [1], [0, 0, 1, 1], [], []>} : vector<2x64xf32>, vector<64x1024xf32>, vector<2x1024xf32> -> vector<2x1024xf32>
    %c0_4 = arith.constant 0 : index
    %c0_5 = arith.constant 0 : index
    %17 = vector.load %arg3[%c0_4, %c0_5] : memref<2x1024xf32, #tpu.memory_space<vmem>>, vector<2x1024xf32>
    tpu.vector_store %arg3[%c0_4, %c0_5], %16 {strides = array<i32>} : memref<2x1024xf32, #tpu.memory_space<vmem>>, vector<2x1024xf32>,
    return
  }
  func.func @transform_0(%arg0: i32) -> (i32, i32) {
    %c0_i32 = arith.constant 0 : i32
    %c0_i32_0 = arith.constant 0 : i32
    return %c0_i32, %arg0 : i32, i32
  }
  func.func @transform_1(%arg0: i32) -> (i32, i32) {
    %c0_i32 = arith.constant 0 : i32
    %c0_i32_0 = arith.constant 0 : i32
    %c0_i32_1 = arith.constant 0 : i32
    return %c0_i32, %c0_i32_0 : i32, i32
  }
  func.func @transform_2(%arg0: i32) -> (i32, i32) {
    %c0_i32 = arith.constant 0 : i32
    %c0_i32_0 = arith.constant 0 : i32
    return %c0_i32, %arg0 : i32, i32
  }
}

</mosaic_0001>

<llo_original>
// kernel: tpu_custom_call.1
$region0: #{tpu_custom_call.1}
  #allocation0 [shape = 'u32[]', space=smem, size = 0x4, offset = 0x4, fixed_abs, tag = 'smem constant byte address 0x4 - core index']
  #allocation1 [shape = 'u32[144,128]{1,0:T(1,128)}', space=vmem, size = 0x12000, scoped, tag = 'internal scratch']
  %s0 = inlined_call_operand.hbm [shape: s32[1,2048], index: 0, kind: input, shape index: {}]
  %s1 = inlined_call_operand.vmem [shape: f32[2,64], index: 1, kind: input, shape index: {}]
  %s2 = inlined_call_operand.hbm [shape: f32[2,2048], index: 2, kind: output, shape index: {}]
  %s3 = sld [smem:[#allocation0]]
  $region45: #{tpu_custom_call.1} parent=0
    _
  %s5 = ssub.s32 1, %s3
  %s6 = scalar_select 0, %s5, %s3
  $region1: #{tpu_custom_call.1} parent=0
    #allocation2 [shape = 'u8[8192]{0}', space=vmem, size = 0x2000, scoped, tag = 'input window, operand 0']
    #allocation3 [shape = 's32[2]{0}', space=sflag, size = 0x8, scoped, tag = 'scoped memory for tpu_custom_call.1']
    #allocation4 [shape = 's32[2]{0}', space=sflag, size = 0x8, scoped, tag = 'scoped memory for tpu_custom_call.1']
    #allocation5 [shape = 'u8[16384]{0}', space=vmem, size = 0x4000, scoped, tag = 'output window, operand 0']
    %7 = vsyncpa [#allocation3], 0
    %s8 = scalar_lea.sflag [#allocation3], 1
    %9 = vsyncpa %s8, 0
    %10 = vsyncpa [#allocation4], 0
    %s11 = scalar_lea.sflag [#allocation4], 1
    %12 = vsyncpa %s11, 0
    loop: start=0, step=1, limit=4
    $region2: #{tpu_custom_call.1} parent=1 // loop_pre_header
      _
    $region3: #{tpu_custom_call.1} parent=1 // loop_header
      %s14 = sphi 0, %s18
      %p15 = scmp.ge.s32.totalorder %s14, 4
      %s24 = sphi 0, %s26
      %s27 = sphi 0, %s24
      %s28 = sphi 0, %s27
      %s44 = sphi 0, %s28
      %s48 = sphi 0, %s48
      %s50 = sphi 0, %s48
      %s51 = sphi 0, %s50
      %s65 = sphi 0, %s51
      %s71 = sphi 0, %s73
      %s74 = sphi 0, %s71
      %s75 = sphi 0, %s74
      %s91 = sphi 0, %s75
    $region4: #{tpu_custom_call.1} parent=1 // loop_header_branch
      %17 = sbr.rel (%p15) target = $region8
    $region5: #{tpu_custom_call.1} parent=1 // loop_body
      %s19 = ssub.s32 %s14, 1
      %s20 = ssub.s32 %s14, 2
      %s21 = sadd.s32 %s14, 1
      %s22 = ssub.s32 %s14, %s21
      %p23 = scmp.eq.s32.totalorder %s22, 0
      %s25 = sadd.s32 %s24, 1
      %s26 = scalar_select %p23, %s24, %s25
      %p29 = pneg %p23
      %p30 = scmp.eq.s32.totalorder %s14, 1
      %p31 = por %p29, %p30
      %p32 = scmp.ne.s32.totalorder %s24, %s27
      %p33 = scmp.eq.s32.totalorder %s14, 0
      %p34 = por %p32, %p33
      %p35 = scmp.ne.s32.totalorder %s24, %s27
      %p36 = scmp.eq.s32.totalorder %s19, 1
      %p37 = por %p35, %p36
      %p38 = scmp.ne.s32.totalorder %s27, %s28
      %p39 = scmp.eq.s32.totalorder %s19, 0
      %p40 = por %p38, %p39
      %p41 = scmp.ne.s32.totalorder %s27, %s28
      %p42 = scmp.eq.s32.totalorder %s20, 1
      %p43 = por %p41, %p42
      %p45 = scmp.ne.s32.totalorder %s28, %s44
      %p46 = scmp.eq.s32.totalorder %s20, 0
      %p47 = por %p45, %p46
      %s49 = sadd.s32 %s48, 1
      %p52 = scmp.eq.s32.totalorder %s14, 1
      %p53 = scmp.ne.s32.totalorder %s48, %s50
      %p54 = scmp.eq.s32.totalorder %s14, 0
      %p55 = por %p53, %p54
      %p56 = scmp.ne.s32.totalorder %s48, %s50
      %p57 = scmp.eq.s32.totalorder %s19, 1
      %p58 = por %p56, %p57
      %p59 = scmp.ne.s32.totalorder %s50, %s51
      %p60 = scmp.eq.s32.totalorder %s19, 0
      %p61 = por %p59, %p60
      %p62 = scmp.ne.s32.totalorder %s50, %s51
      %p63 = scmp.eq.s32.totalorder %s20, 1
      %p64 = por %p62, %p63
      %p66 = scmp.ne.s32.totalorder %s51, %s65
      %p67 = scmp.eq.s32.totalorder %s20, 0
      %p68 = por %p66, %p67
      %s69 = ssub.s32 %s14, %s21
      %p70 = scmp.eq.s32.totalorder %s69, 0
      %s72 = sadd.s32 %s71, 1
      %s73 = scalar_select %p70, %s71, %s72
      %p76 = pneg %p70
      %p77 = scmp.eq.s32.totalorder %s14, 1
      %p78 = por %p76, %p77
      %p79 = scmp.ne.s32.totalorder %s71, %s74
      %p80 = scmp.eq.s32.totalorder %s14, 0
      %p81 = por %p79, %p80
      %p82 = scmp.ne.s32.totalorder %s71, %s74
      %p83 = scmp.eq.s32.totalorder %s19, 1
      %p84 = por %p82, %p83
      %p85 = scmp.ne.s32.totalorder %s74, %s75
      %p86 = scmp.eq.s32.totalorder %s19, 0
      %p87 = por %p85, %p86
      %p88 = scmp.ne.s32.totalorder %s74, %s75
      %p89 = scmp.eq.s32.totalorder %s20, 1
      %p90 = por %p88, %p89
      %p92 = scmp.ne.s32.totalorder %s75, %s91
      %p93 = scmp.eq.s32.totalorder %s20, 0
      %p94 = por %p92, %p93
      %p95 = scmp.le.s32.totalorder 1, %s14
      %p96 = scmp.lt.s32.totalorder %s14, 3
      %p97 = pnand %p95, %p96
      %p98 = pneg %p97
      // Predicated region
      $region9: #{tpu_custom_call.1} parent=5 // pred_check
        _
      $region10: #{tpu_custom_call.1} parent=5 // pred_check_branch
        %100 = sbr.rel (%p97) target = $region12
      $region11: #{tpu_custom_call.1} parent=5 // pred_region
        %s101 = ssub.s32 %s14, 1
        // Predicated region
        $region13: #{tpu_custom_call.1} parent=11 // pred_check
          %p102 = pneg %p61
        $region14: #{tpu_custom_call.1} parent=11 // pred_check_branch
          %104 = sbr.rel (%p102) target = $region16
        $region15: #{tpu_custom_call.1} parent=11 // pred_region
          _
        $region16: #{tpu_custom_call.1} parent=11 // pred_fallthru
          _
      $region12: #{tpu_custom_call.1} parent=5 // pred_fallthru
        _
      %p105 = scmp.lt.s32.totalorder %s14, 2
      // Predicated region
      $region17: #{tpu_custom_call.1} parent=5 // pred_check
        %p106 = pneg %p105
      $region18: #{tpu_custom_call.1} parent=5 // pred_check_branch
        %108 = sbr.rel (%p106) target = $region20
      $region19: #{tpu_custom_call.1} parent=5 // pred_region
        // Predicated region
        $region21: #{tpu_custom_call.1} parent=19 // pred_check
          %p109 = pneg %p34
        $region22: #{tpu_custom_call.1} parent=19 // pred_check_branch
          %111 = sbr.rel (%p109) target = $region24
        $region23: #{tpu_custom_call.1} parent=19 // pred_region
          %s112 = sand.u32 %s24, 1
          %s113 = scalar_lea.sflag [#allocation3], %s112
          %s114 = sand.u32 %s24, 1
          %s115 = smul.addr %s114, 8
          %s116 = scalar_lea.vmem [#allocation2], %s115
          %s117 = smul.u32 8, %s14
          %s119 = ssub.s32 128, 128
          %120 = vsyncadd %s113, %s119
          %s121 = smul.addr %s117, 16
          %s122 = scalar_lea.hbm %s0, %s121
          %s124 = sshll.u32 %s116, 4
          %s125 = int_to_ptr.vmem [resolvable:$true] %s124
          %127 = dma.hbm_to_vmem [thread:$0]  %s122, 128, %s125, %s113
        $region24: #{tpu_custom_call.1} parent=19 // pred_fallthru
          _
      $region20: #{tpu_custom_call.1} parent=5 // pred_fallthru
        _
      %p128 = scmp.le.s32.totalorder 1, %s14
      %p129 = scmp.lt.s32.totalorder %s14, 3
      %p130 = pnand %p128, %p129
      %p131 = pneg %p130
      // Predicated region
      $region25: #{tpu_custom_call.1} parent=5 // pred_check
        _
      $region26: #{tpu_custom_call.1} parent=5 // pred_check_branch
        %133 = sbr.rel (%p130) target = $region28
      $region27: #{tpu_custom_call.1} parent=5 // pred_region
        %s134 = ssub.s32 %s14, 1
        %s135 = sand.u32 %s27, 1
        %s136 = scalar_lea.sflag [#allocation3], %s135
        %s137 = sand.u32 %s27, 1
        %s138 = smul.addr %s137, 8
        %s139 = scalar_lea.vmem [#allocation2], %s138
        // Predicated region
        $region29: #{tpu_custom_call.1} parent=27 // pred_check
          %p140 = pneg %p40
        $region30: #{tpu_custom_call.1} parent=27 // pred_check_branch
          %142 = sbr.rel (%p140) target = $region32
        $region31: #{tpu_custom_call.1} parent=27 // pred_region
          %143 = dma.done %s136, 128
        $region32: #{tpu_custom_call.1} parent=27 // pred_fallthru
          _
        %s144 = sand.u32 %s27, 1
        %s145 = scalar_lea.sflag [#allocation3], %s144
        %s146 = sand.u32 %s27, 1
        %s147 = smul.addr %s146, 8
        %s148 = scalar_lea.vmem [#allocation2], %s147
        %p149 = pneg %p40
        %p150 = pneg %p37
        %p151 = pneg %p61
        %p152 = pneg %p58
        %p153 = pneg %p87
        %p154 = pneg %p84
        %s155 = sand.u32 %s74, 1
        %s156 = scalar_lea.sflag [#allocation4], %s155
        %s157 = sand.u32 %s74, 1
        %s158 = smul.addr %s157, 16
        %s159 = scalar_lea.vmem [#allocation5], %s158
        %s160 = smul.u32 8, %s19
        %s161 = smul.u32 8, %s19
        %v162 = vld [vmem:[%s139] sm:$0xff]
        %vm163 = vcmp.lt.s32.totalorder %v162, 0
        %v164 = vadd.s32 %v162, 64
        %v165 = vsel %vm163, %v164, %v162
        %vm166 = vcmp.gt.s32.totalorder %v165, 0
        %v167 = vsel %vm166, %v165, 0
        %vm168 = vcmp.lt.s32.totalorder %v167, 63
        %v169 = vsel %vm168, %v167, 63
        %v170 = vlaneseq
        %v171 = vshrl.u32 %v170, 7
        %v172 = vadd.s32 %v171, 8
        %v173 = vadd.s32 %v171, 16
        %v174 = vadd.s32 %v171, 24
        %v175 = vadd.s32 %v171, 32
        %v176 = vadd.s32 %v171, 40
        %v177 = vadd.s32 %v171, 48
        %v178 = vadd.s32 %v171, 56
        %v179 = vlaneseq
        %v180 = vshrl.u32 %v179, 7
        %v181 = vsub.s32 0, %v180
        %v182 = vrot.slane %v169, %v181
        %v183 = vlaneseq
        %v184 = vshrl.u32 %v183, 7
        %v185 = vsub.s32 1, %v184
        %v186 = vrot.slane %v169, %v185
        %v187 = vlaneseq
        %v188 = vshrl.u32 %v187, 7
        %v189 = vsub.s32 2, %v188
        %v190 = vrot.slane %v169, %v189
        %v191 = vlaneseq
        %v192 = vshrl.u32 %v191, 7
        %v193 = vsub.s32 3, %v192
        %v194 = vrot.slane %v169, %v193
        %v195 = vlaneseq
        %v196 = vshrl.u32 %v195, 7
        %v197 = vsub.s32 4, %v196
        %v198 = vrot.slane %v169, %v197
        %v199 = vlaneseq
        %v200 = vshrl.u32 %v199, 7
        %v201 = vsub.s32 5, %v200
        %v202 = vrot.slane %v169, %v201
        %v203 = vlaneseq
        %v204 = vshrl.u32 %v203, 7
        %v205 = vsub.s32 6, %v204
        %v206 = vrot.slane %v169, %v205
        %v207 = vlaneseq
        %v208 = vshrl.u32 %v207, 7
        %v209 = vsub.s32 7, %v208
        %v210 = vrot.slane %v169, %v209
        %vm211 = vcmp.eq.s32.totalorder %v171, %v182
        %vm212 = vcmp.eq.s32.totalorder %v171, %v186
        %vm213 = vcmp.eq.s32.totalorder %v171, %v190
        %vm214 = vcmp.eq.s32.totalorder %v171, %v194
        %vm215 = vcmp.eq.s32.totalorder %v171, %v198
        %vm216 = vcmp.eq.s32.totalorder %v171, %v202
        %vm217 = vcmp.eq.s32.totalorder %v171, %v206
        %vm218 = vcmp.eq.s32.totalorder %v171, %v210
        %vm219 = vcmp.eq.s32.totalorder %v172, %v182
        %vm220 = vcmp.eq.s32.totalorder %v172, %v186
        %vm221 = vcmp.eq.s32.totalorder %v172, %v190
        %vm222 = vcmp.eq.s32.totalorder %v172, %v194
        %vm223 = vcmp.eq.s32.totalorder %v172, %v198
        %vm224 = vcmp.eq.s32.totalorder %v172, %v202
        %vm225 = vcmp.eq.s32.totalorder %v172, %v206
        %vm226 = vcmp.eq.s32.totalorder %v172, %v210
        %vm227 = vcmp.eq.s32.totalorder %v173, %v182
        %vm228 = vcmp.eq.s32.totalorder %v173, %v186
        %vm229 = vcmp.eq.s32.totalorder %v173, %v190
        %vm230 = vcmp.eq.s32.totalorder %v173, %v194
        %vm231 = vcmp.eq.s32.totalorder %v173, %v198
        %vm232 = vcmp.eq.s32.totalorder %v173, %v202
        %vm233 = vcmp.eq.s32.totalorder %v173, %v206
        %vm234 = vcmp.eq.s32.totalorder %v173, %v210
        %vm235 = vcmp.eq.s32.totalorder %v174, %v182
        %vm236 = vcmp.eq.s32.totalorder %v174, %v186
        %vm237 = vcmp.eq.s32.totalorder %v174, %v190
        %vm238 = vcmp.eq.s32.totalorder %v174, %v194
        %vm239 = vcmp.eq.s32.totalorder %v174, %v198
        %vm240 = vcmp.eq.s32.totalorder %v174, %v202
        %vm241 = vcmp.eq.s32.totalorder %v174, %v206
        %vm242 = vcmp.eq.s32.totalorder %v174, %v210
        %vm243 = vcmp.eq.s32.totalorder %v175, %v182
        %vm244 = vcmp.eq.s32.totalorder %v175, %v186
        %vm245 = vcmp.eq.s32.totalorder %v175, %v190
        %vm246 = vcmp.eq.s32.totalorder %v175, %v194
        %vm247 = vcmp.eq.s32.totalorder %v175, %v198
        %vm248 = vcmp.eq.s32.totalorder %v175, %v202
        %vm249 = vcmp.eq.s32.totalorder %v175, %v206
        %vm250 = vcmp.eq.s32.totalorder %v175, %v210
        %vm251 = vcmp.eq.s32.totalorder %v176, %v182
        %vm252 = vcmp.eq.s32.totalorder %v176, %v186
        %vm253 = vcmp.eq.s32.totalorder %v176, %v190
        %vm254 = vcmp.eq.s32.totalorder %v176, %v194
        %vm255 = vcmp.eq.s32.totalorder %v176, %v198
        %vm256 = vcmp.eq.s32.totalorder %v176, %v202
        %vm257 = vcmp.eq.s32.totalorder %v176, %v206
        %vm258 = vcmp.eq.s32.totalorder %v176, %v210
        %vm259 = vcmp.eq.s32.totalorder %v177, %v182
        %vm260 = vcmp.eq.s32.totalorder %v177, %v186
        %vm261 = vcmp.eq.s32.totalorder %v177, %v190
        %vm262 = vcmp.eq.s32.totalorder %v177, %v194
        %vm263 = vcmp.eq.s32.totalorder %v177, %v198
        %vm264 = vcmp.eq.s32.totalorder %v177, %v202
        %vm265 = vcmp.eq.s32.totalorder %v177, %v206
        %vm266 = vcmp.eq.s32.totalorder %v177, %v210
        %vm267 = vcmp.eq.s32.totalorder %v178, %v182
        %vm268 = vcmp.eq.s32.totalorder %v178, %v186
        %vm269 = vcmp.eq.s32.totalorder %v178, %v190
        %vm270 = vcmp.eq.s32.totalorder %v178, %v194
        %vm271 = vcmp.eq.s32.totalorder %v178, %v198
        %vm272 = vcmp.eq.s32.totalorder %v178, %v202
        %vm273 = vcmp.eq.s32.totalorder %v178, %v206
        %vm274 = vcmp.eq.s32.totalorder %v178, %v210
        %v275 = vsel %vm211, 1, 0
        %v276 = vsel %vm212, 1, 0
        %v277 = vsel %vm213, 1, 0
        %v278 = vsel %vm214, 1, 0
        %v279 = vsel %vm215, 1, 0
        %v280 = vsel %vm216, 1, 0
        %v281 = vsel %vm217, 1, 0
        %v282 = vsel %vm218, 1, 0
        %v283 = vsel %vm219, 1, 0
        %v284 = vsel %vm220, 1, 0
        %v285 = vsel %vm221, 1, 0
        %v286 = vsel %vm222, 1, 0
        %v287 = vsel %vm223, 1, 0
        %v288 = vsel %vm224, 1, 0
        %v289 = vsel %vm225, 1, 0
        %v290 = vsel %vm226, 1, 0
        %v291 = vsel %vm227, 1, 0
        %v292 = vsel %vm228, 1, 0
        %v293 = vsel %vm229, 1, 0
        %v294 = vsel %vm230, 1, 0
        %v295 = vsel %vm231, 1, 0
        %v296 = vsel %vm232, 1, 0
        %v297 = vsel %vm233, 1, 0
        %v298 = vsel %vm234, 1, 0
        %v299 = vsel %vm235, 1, 0
        %v300 = vsel %vm236, 1, 0
        %v301 = vsel %vm237, 1, 0
        %v302 = vsel %vm238, 1, 0
        %v303 = vsel %vm239, 1, 0
        %v304 = vsel %vm240, 1, 0
        %v305 = vsel %vm241, 1, 0
        %v306 = vsel %vm242, 1, 0
        %v307 = vsel %vm243, 1, 0
        %v308 = vsel %vm244, 1, 0
        %v309 = vsel %vm245, 1, 0
        %v310 = vsel %vm246, 1, 0
        %v311 = vsel %vm247, 1, 0
        %v312 = vsel %vm248, 1, 0
        %v313 = vsel %vm249, 1, 0
        %v314 = vsel %vm250, 1, 0
        %v315 = vsel %vm251, 1, 0
        %v316 = vsel %vm252, 1, 0
        %v317 = vsel %vm253, 1, 0
        %v318 = vsel %vm254, 1, 0
        %v319 = vsel %vm255, 1, 0
        %v320 = vsel %vm256, 1, 0
        %v321 = vsel %vm257, 1, 0
        %v322 = vsel %vm258, 1, 0
        %v323 = vsel %vm259, 1, 0
        %v324 = vsel %vm260, 1, 0
        %v325 = vsel %vm261, 1, 0
        %v326 = vsel %vm262, 1, 0
        %v327 = vsel %vm263, 1, 0
        %v328 = vsel %vm264, 1, 0
        %v329 = vsel %vm265, 1, 0
        %v330 = vsel %vm266, 1, 0
        %v331 = vsel %vm267, 1, 0
        %v332 = vsel %vm268, 1, 0
        %v333 = vsel %vm269, 1, 0
        %v334 = vsel %vm270, 1, 0
        %v335 = vsel %vm271, 1, 0
        %v336 = vsel %vm272, 1, 0
        %v337 = vsel %vm273, 1, 0
        %v338 = vsel %vm274, 1, 0
        %v339 = vcvt.s32.f32 %v275
        %v340 = vcvt.s32.f32 %v276
        %v341 = vcvt.s32.f32 %v277
        %v342 = vcvt.s32.f32 %v278
        %v343 = vcvt.s32.f32 %v279
        %v344 = vcvt.s32.f32 %v280
        %v345 = vcvt.s32.f32 %v281
        %v346 = vcvt.s32.f32 %v282
        %v347 = vcvt.s32.f32 %v283
        %v348 = vcvt.s32.f32 %v284
        %v349 = vcvt.s32.f32 %v285
        %v350 = vcvt.s32.f32 %v286
        %v351 = vcvt.s32.f32 %v287
        %v352 = vcvt.s32.f32 %v288
        %v353 = vcvt.s32.f32 %v289
        %v354 = vcvt.s32.f32 %v290
        %v355 = vcvt.s32.f32 %v291
        %v356 = vcvt.s32.f32 %v292
        %v357 = vcvt.s32.f32 %v293
        %v358 = vcvt.s32.f32 %v294
        %v359 = vcvt.s32.f32 %v295
        %v360 = vcvt.s32.f32 %v296
        %v361 = vcvt.s32.f32 %v297
        %v362 = vcvt.s32.f32 %v298
        %v363 = vcvt.s32.f32 %v299
        %v364 = vcvt.s32.f32 %v300
        %v365 = vcvt.s32.f32 %v301
        %v366 = vcvt.s32.f32 %v302
        %v367 = vcvt.s32.f32 %v303
        %v368 = vcvt.s32.f32 %v304
        %v369 = vcvt.s32.f32 %v305
        %v370 = vcvt.s32.f32 %v306
        %v371 = vcvt.s32.f32 %v307
        %v372 = vcvt.s32.f32 %v308
        %v373 = vcvt.s32.f32 %v309
        %v374 = vcvt.s32.f32 %v310
        %v375 = vcvt.s32.f32 %v311
        %v376 = vcvt.s32.f32 %v312
        %v377 = vcvt.s32.f32 %v313
        %v378 = vcvt.s32.f32 %v314
        %v379 = vcvt.s32.f32 %v315
        %v380 = vcvt.s32.f32 %v316
        %v381 = vcvt.s32.f32 %v317
        %v382 = vcvt.s32.f32 %v318
        %v383 = vcvt.s32.f32 %v319
        %v384 = vcvt.s32.f32 %v320
        %v385 = vcvt.s32.f32 %v321
        %v386 = vcvt.s32.f32 %v322
        %v387 = vcvt.s32.f32 %v323
        %v388 = vcvt.s32.f32 %v324
        %v389 = vcvt.s32.f32 %v325
        %v390 = vcvt.s32.f32 %v326
        %v391 = vcvt.s32.f32 %v327
        %v392 = vcvt.s32.f32 %v328
        %v393 = vcvt.s32.f32 %v329
        %v394 = vcvt.s32.f32 %v330
        %v395 = vcvt.s32.f32 %v331
        %v396 = vcvt.s32.f32 %v332
        %v397 = vcvt.s32.f32 %v333
        %v398 = vcvt.s32.f32 %v334
        %v399 = vcvt.s32.f32 %v335
        %v400 = vcvt.s32.f32 %v336
        %v401 = vcvt.s32.f32 %v337
        %v402 = vcvt.s32.f32 %v338
        %v403 = vld [vmem:[%s1] sm:$0x3]
        %vm404 = vcmask 523264
        %v406 = vsel %vm404, %v403, 0
        %408 = vmatprep.subr.mxu0 %v340
        %409 = vmatpush1.msra.mxu0 %v339
        %410 = vmatprep.subr.mxu0 %v348
        %411 = vmatpush1.msra.mxu0 %v347
        %412 = vmatprep.subr.mxu0 %v356
        %413 = vmatpush1.msra.mxu0 %v355
        %414 = vmatprep.subr.mxu0 %v364
        %415 = vmatpush1.msra.mxu0 %v363
        %416 = vmatprep.subr.mxu0 %v372
        %417 = vmatpush1.msra.mxu0 %v371
        %418 = vmatprep.subr.mxu0 %v380
        %419 = vmatpush1.msra.mxu0 %v379
        %420 = vmatprep.subr.mxu0 %v388
        %421 = vmatpush1.msra.mxu0 %v387
        %422 = vmatprep.subr.mxu0 %v396
        %423 = vmatpush1.msra.mxu0 %v395
        %424 = vmatprep.subr.mxu0 0.0
        %425 = vmatpush1.msra.mxu0 0.0
        %426 = vmatprep.subr.mxu0 0.0
        %427 = vmatpush1.msra.mxu0 0.0
        %428 = vmatprep.subr.mxu0 0.0
        %429 = vmatpush1.msra.mxu0 0.0
        %430 = vmatprep.subr.mxu0 0.0
        %431 = vmatpush1.msra.mxu0 0.0
        %432 = vmatprep.subr.mxu0 0.0
        %433 = vmatpush1.msra.mxu0 0.0
        %434 = vmatprep.subr.mxu0 0.0
        %435 = vmatpush1.msra.mxu0 0.0
        %436 = vmatprep.subr.mxu0 0.0
        %437 = vmatpush1.msra.mxu0 0.0
        %438 = vmatprep.subr.mxu0 0.0
        %439 = vmatpush1.msra.mxu0 0.0
        %440 = vmatprep.subr.mxu0 0.0
        %441 = vmatpush1.msra.mxu0 0.0
        %442 = vmatprep.subr.mxu0 0.0
        %443 = vmatpush1.msra.mxu0 0.0
        %444 = vmatprep.subr.mxu0 0.0
        %445 = vmatpush1.msra.mxu0 0.0
        %446 = vmatprep.subr.mxu0 0.0
        %447 = vmatpush1.msra.mxu0 0.0
        %448 = vmatprep.subr.mxu0 0.0
        %449 = vmatpush1.msra.mxu0 0.0
        %450 = vmatprep.subr.mxu0 0.0
        %451 = vmatpush1.msra.mxu0 0.0
        %452 = vmatprep.subr.mxu0 0.0
        %453 = vmatpush1.msra.mxu0 0.0
        %454 = vmatprep.subr.mxu0 0.0
        %455 = vmatpush1.msra.mxu0 0.0
        %456 = vmatprep.subr.mxu0 0.0
        %457 = vmatpush1.msra.mxu0 0.0
        %458 = vmatprep.subr.mxu0 0.0
        %459 = vmatpush1.msra.mxu0 0.0
        %460 = vmatprep.subr.mxu0 0.0
        %461 = vmatpush1.msra.mxu0 0.0
        %462 = vmatprep.subr.mxu0 0.0
        %463 = vmatpush1.msra.mxu0 0.0
        %464 = vmatprep.subr.mxu0 0.0
        %465 = vmatpush1.msra.mxu0 0.0
        %466 = vmatprep.subr.mxu0 0.0
        %467 = vmatpush1.msra.mxu0 0.0
        %468 = vmatprep.subr.mxu0 0.0
        %469 = vmatpush1.msra.mxu0 0.0
        %470 = vmatprep.subr.mxu0 0.0
        %471 = vmatpush1.msra.mxu0 0.0
        %472 = vmatprep.mubr.f32.mxu0 0.0
        %473 = vmatmul.mubr.f32.gmra.mrb[0].mxu0 %v406
        %v474 = vpop.f32.mrb[0].mxu0
        %v475 = vadd.f32 0.0, %v474
        %v476 = vpop.f32.mrb[0].mxu0
        %v477 = vadd.f32 0.0, %v476
        %478 = vdwg.mxu0
        %479 = vmatprep.subr.mxu0 %v342
        %480 = vmatpush1.msra.mxu0 %v341
        %481 = vmatprep.subr.mxu0 %v350
        %482 = vmatpush1.msra.mxu0 %v349
        %483 = vmatprep.subr.mxu0 %v358
        %484 = vmatpush1.msra.mxu0 %v357
        %485 = vmatprep.subr.mxu0 %v366
        %486 = vmatpush1.msra.mxu0 %v365
        %487 = vmatprep.subr.mxu0 %v374
        %488 = vmatpush1.msra.mxu0 %v373
        %489 = vmatprep.subr.mxu0 %v382
        %490 = vmatpush1.msra.mxu0 %v381
        %491 = vmatprep.subr.mxu0 %v390
        %492 = vmatpush1.msra.mxu0 %v389
        %493 = vmatprep.subr.mxu0 %v398
        %494 = vmatpush1.msra.mxu0 %v397
        %495 = vmatprep.subr.mxu0 0.0
        %496 = vmatpush1.msra.mxu0 0.0
        %497 = vmatprep.subr.mxu0 0.0
        %498 = vmatpush1.msra.mxu0 0.0
        %499 = vmatprep.subr.mxu0 0.0
        %500 = vmatpush1.msra.mxu0 0.0
        %501 = vmatprep.subr.mxu0 0.0
        %502 = vmatpush1.msra.mxu0 0.0
        %503 = vmatprep.subr.mxu0 0.0
        %504 = vmatpush1.msra.mxu0 0.0
        %505 = vmatprep.subr.mxu0 0.0
        %506 = vmatpush1.msra.mxu0 0.0
        %507 = vmatprep.subr.mxu0 0.0
        %508 = vmatpush1.msra.mxu0 0.0
        %509 = vmatprep.subr.mxu0 0.0
        %510 = vmatpush1.msra.mxu0 0.0
        %511 = vmatprep.subr.mxu0 0.0
        %512 = vmatpush1.msra.mxu0 0.0
        %513 = vmatprep.subr.mxu0 0.0
        %514 = vmatpush1.msra.mxu0 0.0
        %515 = vmatprep.subr.mxu0 0.0
        %516 = vmatpush1.msra.mxu0 0.0
        %517 = vmatprep.subr.mxu0 0.0
        %518 = vmatpush1.msra.mxu0 0.0
        %519 = vmatprep.subr.mxu0 0.0
        %520 = vmatpush1.msra.mxu0 0.0
        %521 = vmatprep.subr.mxu0 0.0
        %522 = vmatpush1.msra.mxu0 0.0
        %523 = vmatprep.subr.mxu0 0.0
        %524 = vmatpush1.msra.mxu0 0.0
        %525 = vmatprep.subr.mxu0 0.0
        %526 = vmatpush1.msra.mxu0 0.0
        %527 = vmatprep.subr.mxu0 0.0
        %528 = vmatpush1.msra.mxu0 0.0
        %529 = vmatprep.subr.mxu0 0.0
        %530 = vmatpush1.msra.mxu0 0.0
        %531 = vmatprep.subr.mxu0 0.0
        %532 = vmatpush1.msra.mxu0 0.0
        %533 = vmatprep.subr.mxu0 0.0
        %534 = vmatpush1.msra.mxu0 0.0
        %535 = vmatprep.subr.mxu0 0.0
        %536 = vmatpush1.msra.mxu0 0.0
        %537 = vmatprep.subr.mxu0 0.0
        %538 = vmatpush1.msra.mxu0 0.0
        %539 = vmatprep.subr.mxu0 0.0
        %540 = vmatpush1.msra.mxu0 0.0
        %541 = vmatprep.subr.mxu0 0.0
        %542 = vmatpush1.msra.mxu0 0.0
        %543 = vmatprep.mubr.f32.mxu0 0.0
        %544 = vmatmul.mubr.f32.gmra.mrb[0].mxu0 %v406
        %v545 = vpop.f32.mrb[0].mxu0
        %v546 = vadd.f32 0.0, %v545
        %v547 = vpop.f32.mrb[0].mxu0
        %v548 = vadd.f32 0.0, %v547
        %549 = vdwg.mxu0
        %550 = vmatprep.subr.mxu0 %v344
        %551 = vmatpush1.msra.mxu0 %v343
        %552 = vmatprep.subr.mxu0 %v352
        %553 = vmatpush1.msra.mxu0 %v351
        %554 = vmatprep.subr.mxu0 %v360
        %555 = vmatpush1.msra.mxu0 %v359
        %556 = vmatprep.subr.mxu0 %v368
        %557 = vmatpush1.msra.mxu0 %v367
        %558 = vmatprep.subr.mxu0 %v376
        %559 = vmatpush1.msra.mxu0 %v375
        %560 = vmatprep.subr.mxu0 %v384
        %561 = vmatpush1.msra.mxu0 %v383
        %562 = vmatprep.subr.mxu0 %v392
        %563 = vmatpush1.msra.mxu0 %v391
        %564 = vmatprep.subr.mxu0 %v400
        %565 = vmatpush1.msra.mxu0 %v399
        %566 = vmatprep.subr.mxu0 0.0
        %567 = vmatpush1.msra.mxu0 0.0
        %568 = vmatprep.subr.mxu0 0.0
        %569 = vmatpush1.msra.mxu0 0.0
        %570 = vmatprep.subr.mxu0 0.0
        %571 = vmatpush1.msra.mxu0 0.0
        %572 = vmatprep.subr.mxu0 0.0
        %573 = vmatpush1.msra.mxu0 0.0
        %574 = vmatprep.subr.mxu0 0.0
        %575 = vmatpush1.msra.mxu0 0.0
        %576 = vmatprep.subr.mxu0 0.0
        %577 = vmatpush1.msra.mxu0 0.0
        %578 = vmatprep.subr.mxu0 0.0
        %579 = vmatpush1.msra.mxu0 0.0
        %580 = vmatprep.subr.mxu0 0.0
        %581 = vmatpush1.msra.mxu0 0.0
        %582 = vmatprep.subr.mxu0 0.0
        %583 = vmatpush1.msra.mxu0 0.0
        %584 = vmatprep.subr.mxu0 0.0
        %585 = vmatpush1.msra.mxu0 0.0
        %586 = vmatprep.subr.mxu0 0.0
        %587 = vmatpush1.msra.mxu0 0.0
        %588 = vmatprep.subr.mxu0 0.0
        %589 = vmatpush1.msra.mxu0 0.0
        %590 = vmatprep.subr.mxu0 0.0
        %591 = vmatpush1.msra.mxu0 0.0
        %592 = vmatprep.subr.mxu0 0.0
        %593 = vmatpush1.msra.mxu0 0.0
        %594 = vmatprep.subr.mxu0 0.0
        %595 = vmatpush1.msra.mxu0 0.0
        %596 = vmatprep.subr.mxu0 0.0
        %597 = vmatpush1.msra.mxu0 0.0
        %598 = vmatprep.subr.mxu0 0.0
        %599 = vmatpush1.msra.mxu0 0.0
        %600 = vmatprep.subr.mxu0 0.0
        %601 = vmatpush1.msra.mxu0 0.0
        %602 = vmatprep.subr.mxu0 0.0
        %603 = vmatpush1.msra.mxu0 0.0
        %604 = vmatprep.subr.mxu0 0.0
        %605 = vmatpush1.msra.mxu0 0.0
        %606 = vmatprep.subr.mxu0 0.0
        %607 = vmatpush1.msra.mxu0 0.0
        %608 = vmatprep.subr.mxu0 0.0
        %609 = vmatpush1.msra.mxu0 0.0
        %610 = vmatprep.subr.mxu0 0.0
        %611 = vmatpush1.msra.mxu0 0.0
        %612 = vmatprep.subr.mxu0 0.0
        %613 = vmatpush1.msra.mxu0 0.0
        %614 = vmatprep.mubr.f32.mxu0 0.0
        %615 = vmatmul.mubr.f32.gmra.mrb[0].mxu0 %v406
        %v616 = vpop.f32.mrb[0].mxu0
        %v617 = vadd.f32 0.0, %v616
        %v618 = vpop.f32.mrb[0].mxu0
        %v619 = vadd.f32 0.0, %v618
        %620 = vdwg.mxu0
        %621 = vmatprep.subr.mxu0 %v346
        %622 = vmatpush1.msra.mxu0 %v345
        %623 = vmatprep.subr.mxu0 %v354
        %624 = vmatpush1.msra.mxu0 %v353
        %625 = vmatprep.subr.mxu0 %v362
        %626 = vmatpush1.msra.mxu0 %v361
        %627 = vmatprep.subr.mxu0 %v370
        %628 = vmatpush1.msra.mxu0 %v369
        %629 = vmatprep.subr.mxu0 %v378
        %630 = vmatpush1.msra.mxu0 %v377
        %631 = vmatprep.subr.mxu0 %v386
        %632 = vmatpush1.msra.mxu0 %v385
        %633 = vmatprep.subr.mxu0 %v394
        %634 = vmatpush1.msra.mxu0 %v393
        %635 = vmatprep.subr.mxu0 %v402
        %636 = vmatpush1.msra.mxu0 %v401
        %637 = vmatprep.subr.mxu0 0.0
        %638 = vmatpush1.msra.mxu0 0.0
        %639 = vmatprep.subr.mxu0 0.0
        %640 = vmatpush1.msra.mxu0 0.0
        %641 = vmatprep.subr.mxu0 0.0
        %642 = vmatpush1.msra.mxu0 0.0
        %643 = vmatprep.subr.mxu0 0.0
        %644 = vmatpush1.msra.mxu0 0.0
        %645 = vmatprep.subr.mxu0 0.0
        %646 = vmatpush1.msra.mxu0 0.0
        %647 = vmatprep.subr.mxu0 0.0
        %648 = vmatpush1.msra.mxu0 0.0
        %649 = vmatprep.subr.mxu0 0.0
        %650 = vmatpush1.msra.mxu0 0.0
        %651 = vmatprep.subr.mxu0 0.0
        %652 = vmatpush1.msra.mxu0 0.0
        %653 = vmatprep.subr.mxu0 0.0
        %654 = vmatpush1.msra.mxu0 0.0
        %655 = vmatprep.subr.mxu0 0.0
        %656 = vmatpush1.msra.mxu0 0.0
        %657 = vmatprep.subr.mxu0 0.0
        %658 = vmatpush1.msra.mxu0 0.0
        %659 = vmatprep.subr.mxu0 0.0
        %660 = vmatpush1.msra.mxu0 0.0
        %661 = vmatprep.subr.mxu0 0.0
        %662 = vmatpush1.msra.mxu0 0.0
        %663 = vmatprep.subr.mxu0 0.0
        %664 = vmatpush1.msra.mxu0 0.0
        %665 = vmatprep.subr.mxu0 0.0
        %666 = vmatpush1.msra.mxu0 0.0
        %667 = vmatprep.subr.mxu0 0.0
        %668 = vmatpush1.msra.mxu0 0.0
        %669 = vmatprep.subr.mxu0 0.0
        %670 = vmatpush1.msra.mxu0 0.0
        %671 = vmatprep.subr.mxu0 0.0
        %672 = vmatpush1.msra.mxu0 0.0
        %673 = vmatprep.subr.mxu0 0.0
        %674 = vmatpush1.msra.mxu0 0.0
        %675 = vmatprep.subr.mxu0 0.0
        %676 = vmatpush1.msra.mxu0 0.0
        %677 = vmatprep.subr.mxu0 0.0
        %678 = vmatpush1.msra.mxu0 0.0
        %679 = vmatprep.subr.mxu0 0.0
        %680 = vmatpush1.msra.mxu0 0.0
        %681 = vmatprep.subr.mxu0 0.0
        %682 = vmatpush1.msra.mxu0 0.0
        %683 = vmatprep.subr.mxu0 0.0
        %684 = vmatpush1.msra.mxu0 0.0
        %685 = vmatprep.mubr.f32.mxu0 0.0
        %686 = vmatmul.mubr.f32.gmra.mrb[0].mxu0 %v406
        %v687 = vpop.f32.mrb[0].mxu0
        %v688 = vadd.f32 0.0, %v687
        %v689 = vpop.f32.mrb[0].mxu0
        %v690 = vadd.f32 0.0, %v689
        %691 = vdwg.mxu0
        %v700 = vcombine.low %v475, %v477
        %v701 = vcombine.low %v546, %v548
        %v703 = vunpack.c.l.s4 1983009808
        %v704 = vunpack.c.0.s8 %v703
        %v705 = vlaneseq
        %v706 = vshrl.u32 %v705, 7
        %v707 = vsub.s32 %v704, %v706
        %v708 = vrot.slane %v700, %v707
        %v710 = vunpack.c.l.s4 1983009808
        %v711 = vunpack.c.0.s8 %v710
        %v712 = vlaneseq
        %v713 = vshrl.u32 %v712, 7
        %v714 = vsub.s32 %v711, %v713
        %v715 = vrot.slane %v701, %v714
        %v716 = vcombine.low %v708, %v715
        %v717 = vcombine.low %v617, %v619
        %v718 = vcombine.low %v688, %v690
        %v720 = vunpack.c.l.s4 1983009808
        %v721 = vunpack.c.0.s8 %v720
        %v722 = vlaneseq
        %v723 = vshrl.u32 %v722, 7
        %v724 = vsub.s32 %v721, %v723
        %v725 = vrot.slane %v717, %v724
        %v727 = vunpack.c.l.s4 1983009808
        %v728 = vunpack.c.0.s8 %v727
        %v729 = vlaneseq
        %v730 = vshrl.u32 %v729, 7
        %v731 = vsub.s32 %v728, %v730
        %v732 = vrot.slane %v718, %v731
        %v733 = vcombine.low %v725, %v732
        %736 = vst [vmem:[%s159] sm:$0xff] %v716
        %737 = vst [vmem:[%s159 + $0x8] sm:$0xff] %v733
        %s738 = sand.u32 %s74, 1
        %s739 = scalar_lea.sflag [#allocation4], %s738
        %s740 = sand.u32 %s74, 1
        %s741 = smul.addr %s740, 16
        %s742 = scalar_lea.vmem [#allocation5], %s741
        // Predicated region
        $region33: #{tpu_custom_call.1} parent=27 // pred_check
          %p743 = pneg %p84
        $region34: #{tpu_custom_call.1} parent=27 // pred_check_branch
          %745 = sbr.rel (%p743) target = $region36
        $region35: #{tpu_custom_call.1} parent=27 // pred_region
          %s746 = smul.u32 8, %s19
          %s748 = ssub.s32 256, 256
          %749 = vsyncadd %s739, %s748
          %s750 = smul.addr %s746, 32
          %s751 = scalar_lea.hbm %s2, %s750
          %s753 = sshll.u32 %s742, 4
          %s754 = int_to_ptr.vmem [resolvable:$true] %s753
          %756 = dma.vmem_to_hbm [thread:$0]  %s754, 256, %s751, %s739
        $region36: #{tpu_custom_call.1} parent=27 // pred_fallthru
          _
      $region28: #{tpu_custom_call.1} parent=5 // pred_fallthru
        _
      %p757 = scmp.le.s32.totalorder 2, %s14
      // Predicated region
      $region37: #{tpu_custom_call.1} parent=5 // pred_check
        %p758 = pneg %p757
      $region38: #{tpu_custom_call.1} parent=5 // pred_check_branch
        %760 = sbr.rel (%p758) target = $region40
      $region39: #{tpu_custom_call.1} parent=5 // pred_region
        %s761 = ssub.s32 %s14, 2
        // Predicated region
        $region41: #{tpu_custom_call.1} parent=39 // pred_check
          %p762 = pneg %p90
        $region42: #{tpu_custom_call.1} parent=39 // pred_check_branch
          %764 = sbr.rel (%p762) target = $region44
        $region43: #{tpu_custom_call.1} parent=39 // pred_region
          %s765 = sand.u32 %s75, 1
          %s766 = scalar_lea.sflag [#allocation4], %s765
          %s767 = sand.u32 %s75, 1
          %s768 = smul.addr %s767, 16
          %s769 = scalar_lea.vmem [#allocation5], %s768
          %770 = dma.done %s766, 256
        $region44: #{tpu_custom_call.1} parent=39 // pred_fallthru
          _
      $region40: #{tpu_custom_call.1} parent=5 // pred_fallthru
        _
    $region6: #{tpu_custom_call.1} parent=1 // loop_footer
      %s18 = sadd.s32 1, %s14
    $region7: #{tpu_custom_call.1} parent=1 // loop_footer_branch
      %13 = sbr.rel target = $region3
    $region8: #{tpu_custom_call.1} parent=1 // loop_exit
      _
    %771 = vsyncpa [#allocation3], 1
    %s772 = scalar_lea.sflag [#allocation3], 1
    %773 = vsyncpa %s772, 1
    %774 = vsyncpa [#allocation4], 1
    %s775 = scalar_lea.sflag [#allocation4], 1
    %776 = vsyncpa %s775, 1

</llo_original>
